<compile_context>
chip_gen: v6e
topology: v6e:2x2x1
jax: 0.10.0
libtpu: 0.0.40
codegen_flags: <defaults>
</compile_context>

<pallas_src>
import functools

import jax
import jax.numpy as jnp
from jax.experimental import pallas as pl
from jax.experimental.pallas import tpu as pltpu

_LANE = 128
_SUBLANE = 8
_VMEM_LIMIT = 32 * 1024 * 1024          # >= default scoped VMEM on v5e, == v6e/v7x default
_GEMM_ROW_TILE = 512                    # HBM-bound GEMMs reach ~85% roofline at 512 rows
_STREAM_BUDGET_BYTES = 8 * 1024 * 1024  # budget for the streamed gx/out chunk buffers


def _round_up(x, m):
    return (x + m - 1) // m * m


def _matmul_bias_kernel(x_ref, w_ref, b_ref, o_ref):
    o_ref[...] = (jnp.dot(x_ref[...], w_ref[...],
                          preferred_element_type=jnp.float32)
                  + b_ref[...]).astype(o_ref.dtype)


def _dual_matmul_bias_kernel(a_ref, b_ref, wa_ref, wb_ref, bias_ref, o_ref):
    acc = jnp.dot(a_ref[...], wa_ref[...], preferred_element_type=jnp.float32)
    acc = acc + jnp.dot(b_ref[...], wb_ref[...], preferred_element_type=jnp.float32)
    o_ref[...] = (acc + bias_ref[...]).astype(o_ref.dtype)


def _sigmoid(x):
    # Single EUP op (tanh) per call instead of exp + divide.
    return 0.5 * jnp.tanh(0.5 * x) + 0.5


def _lstm_scan_kernel(gxf_ref, gxb_ref, whf_ref, whb_ref, of_ref, ob_ref,
                      hf, cf, hb, cb, *, hidden, chunk, pad):
    """One grid step == one time chunk; forward and backward chains interleaved.

    gx?_ref: (chunk, Bp, 4*hidden) bf16   x-part of the gates (+ bias), per direction
    wh?_ref: (hidden, 4*hidden)    bf16   recurrent weights, per direction
    o?_ref : (chunk, Bp, hidden)   bf16   hidden outputs for this chunk
    hf/cf/hb/cb: (Bp, hidden) f32 carries; VMEM scratch persists across grid steps.
    """
    c = pl.program_id(0)
    f32, bf16 = jnp.float32, jnp.bfloat16

    @pl.when(c == 0)
    def _():
        # PyTorch default h0 = c0 = 0 for both directions.
        hf[...] = jnp.zeros_like(hf)
        cf[...] = jnp.zeros_like(cf)
        hb[...] = jnp.zeros_like(hb)
        cb[...] = jnp.zeros_like(cb)

    def cell(gates, c_prev):
        # PyTorch gate order i, f, g, o; slices are lane-aligned (hidden % 128 == 0).
        if_g = _sigmoid(gates[:, :2 * hidden])        # i and f in one EUP pass
        i_g = if_g[:, :hidden]
        f_g = if_g[:, hidden:]
        g_g = jnp.tanh(gates[:, 2 * hidden:3 * hidden])
        o_g = _sigmoid(gates[:, 3 * hidden:])
        c_new = f_g * c_prev + i_g * g_g
        h_new = o_g * jnp.tanh(c_new)
        return h_new, c_new

    def step(i, carry):
        # ---- forward chain: local row i of chunk c --------------------------------
        # TODO(synk): hold Whh in the MXU (pltpu.matmul_push_rhs / matmul_acc_lhs /
        # matmul_pop) so the weight push is not re-issued every timestep.
        g_f = gxf_ref[i].astype(f32) + jnp.dot(
            hf[...].astype(bf16), whf_ref[...], preferred_element_type=f32)
        h_f, c_f = cell(g_f, cf[...])
        hf[...] = h_f
        cf[...] = c_f
        of_ref[i] = h_f.astype(of_ref.dtype)

        # ---- backward chain: local row chunk-1-i of chunk nC-1-c (reverse time) ---
        j = chunk - 1 - i
        g_b = gxb_ref[j].astype(f32) + jnp.dot(
            hb[...].astype(bf16), whb_ref[...], preferred_element_type=f32)
        h_b, c_b = cell(g_b, cb[...])

        def commit():
            hb[...] = h_b
            cb[...] = c_b

        if pad:
            # The first `pad` backward steps traverse zero-padded timesteps (their gx
            # rows hold only the bias); skip the state update there so the real last
            # timestep starts from (h, c) = 0, matching PyTorch.
            pl.when(c * chunk + i >= pad)(commit)
        else:
            commit()
        ob_ref[j] = hb[...].astype(ob_ref.dtype)
        return carry

    jax.lax.fori_loop(0, chunk, step, 0, unroll=(chunk <= 8))


def bidirectional_lstm_pallas(x, wih, whh, b_ih, b_hh, w_emb, b_emb, *, time_chunk=None):
    """x: (T, B, nIn); wih: (2, 4H, nIn); whh: (2, 4H, H); b_*: (2, 4H);
    w_emb: (nOut, 2H); b_emb: (nOut,).  Returns (T, B, nOut) float32."""
    f32, bf16 = jnp.float32, jnp.bfloat16
    T, B, nIn = x.shape
    H = wih.shape[1] // 4
    nOut = w_emb.shape[0]
    Hp = _round_up(H, _LANE)            # lane-aligned hidden size
    Bp = _round_up(B, _SUBLANE)         # sublane-aligned batch
    nOutP = _round_up(nOut, _LANE)      # lane-dense final stores
    H4 = 4 * Hp

    # ---- time-chunk size for the streamed recurrence --------------------------------
    if time_chunk is None:
        # double-buffered bf16 gx + out chunks, both directions
        bytes_per_t = 2 * 2 * Bp * (H4 + Hp) * 2
        time_chunk = max(1, _STREAM_BUDGET_BYTES // bytes_per_t)
    Tt = max(1, min(int(time_chunk), T))
    nC = (T + Tt - 1) // Tt
    T_pad = nC * Tt
    pad_t = T_pad - T
    M_pad = T_pad * Bp

    # ---- one-time parameter re-layout (glue, outside the hot path) ------------------
    def prep_dir(d):
        wi = jnp.pad(wih[d].astype(f32).reshape(4, H, nIn),
                     ((0, 0), (0, Hp - H), (0, 0)))
        wi = jnp.transpose(wi, (2, 0, 1)).reshape(nIn, H4).astype(bf16)
        wh = jnp.pad(whh[d].astype(f32).reshape(4, H, H),
                     ((0, 0), (0, Hp - H), (0, Hp - H)))
        wh = jnp.transpose(wh, (2, 0, 1)).reshape(Hp, H4).astype(bf16)
        bias = jnp.pad((b_ih[d] + b_hh[d]).astype(f32).reshape(4, H),
                       ((0, 0), (0, Hp - H))).reshape(1, H4)
        we = jnp.pad(w_emb[:, d * H:(d + 1) * H].astype(f32),
                     ((0, nOutP - nOut), (0, Hp - H))).T.astype(bf16)   # (Hp, nOutP)
        return wi, wh, bias, we

    (wi_f, wh_f, bias_f, we_f), (wi_b, wh_b, bias_b, we_b) = prep_dir(0), prep_dir(1)
    b_e = jnp.pad(b_emb.astype(f32), (0, nOutP - nOut)).reshape(1, nOutP)

    # x padded with zeros along T (time chunking) and B (sublane), stored bf16.
    x_p = jnp.pad(x.astype(f32), ((0, pad_t), (0, Bp - B), (0, 0))).astype(bf16)
    x_flat = x_p.reshape(M_pad, nIn)

    # ---- Kernel 1 (x2): hoisted input projection gates_x[d] = x @ Wih[d].T + bias ---
    tm = min(M_pad, _GEMM_ROW_TILE)

    def project(wi, bias):
        return pl.pallas_call(
            _matmul_bias_kernel,
            out_shape=jax.ShapeDtypeStruct((M_pad, H4), bf16),
            grid_spec=pltpu.PrefetchScalarGridSpec(
                num_scalar_prefetch=0,
                grid=(pl.cdiv(M_pad, tm),),
                in_specs=[
                    pl.BlockSpec((tm, nIn), lambda i: (i, 0)),
                    pl.BlockSpec((nIn, H4), lambda i: (0, 0)),
                    pl.BlockSpec((1, H4), lambda i: (0, 0)),
                ],
                out_specs=pl.BlockSpec((tm, H4), lambda i: (i, 0)),
            ),
            compiler_params=pltpu.CompilerParams(
                dimension_semantics=("parallel",),
                vmem_limit_bytes=_VMEM_LIMIT),
        )(x_flat, wi, bias)

    gx_f = project(wi_f, bias_f).reshape(T_pad, Bp, H4)   # free reshape
    gx_b = project(wi_b, bias_b).reshape(T_pad, Bp, H4)

    # ---- Kernel 2: the recurrence only — time-chunk streamed, fwd/bwd interleaved ---
    rec_f, rec_b = pl.pallas_call(
        functools.partial(_lstm_scan_kernel, hidden=Hp, chunk=Tt, pad=pad_t),
        out_shape=(jax.ShapeDtypeStruct((T_pad, Bp, Hp), bf16),
                   jax.ShapeDtypeStruct((T_pad, Bp, Hp), bf16)),
        grid_spec=pltpu.PrefetchScalarGridSpec(
            num_scalar_prefetch=0,
            grid=(nC,),
            in_specs=[
                pl.BlockSpec((Tt, Bp, H4), lambda c: (c, 0, 0)),            # fwd chunk
                pl.BlockSpec((Tt, Bp, H4), lambda c: (nC - 1 - c, 0, 0)),   # bwd chunk
                pl.BlockSpec((Hp, H4), lambda c: (0, 0)),                   # Whh fwd
                pl.BlockSpec((Hp, H4), lambda c: (0, 0)),                   # Whh bwd
            ],
            out_specs=[
                pl.BlockSpec((Tt, Bp, Hp), lambda c: (c, 0, 0)),            # rec fwd
                pl.BlockSpec((Tt, Bp, Hp), lambda c: (nC - 1 - c, 0, 0)),   # rec bwd
            ],
            scratch_shapes=[pltpu.VMEM((Bp, Hp), f32)] * 4,   # hf, cf, hb, cb carries
        ),
        compiler_params=pltpu.CompilerParams(
            dimension_semantics=("arbitrary",),               # carried state across chunks
            vmem_limit_bytes=_VMEM_LIMIT),
    )(gx_f, gx_b, wh_f, wh_b)

    # ---- Kernel 3: embedding Linear(2H -> nOut); no concatenated rec in HBM ---------
    rf = rec_f.reshape(M_pad, Hp)     # free reshapes
    rb = rec_b.reshape(M_pad, Hp)
    tm2 = min(M_pad, _GEMM_ROW_TILE)
    out = pl.pallas_call(
        _dual_matmul_bias_kernel,
        out_shape=jax.ShapeDtypeStruct((M_pad, nOutP), f32),
        grid_spec=pltpu.PrefetchScalarGridSpec(
            num_scalar_prefetch=0,
            grid=(pl.cdiv(M_pad, tm2),),
            in_specs=[
                pl.BlockSpec((tm2, Hp), lambda i: (i, 0)),
                pl.BlockSpec((tm2, Hp), lambda i: (i, 0)),
                pl.BlockSpec((Hp, nOutP), lambda i: (0, 0)),
                pl.BlockSpec((Hp, nOutP), lambda i: (0, 0)),
                pl.BlockSpec((1, nOutP), lambda i: (0, 0)),
            ],
            out_specs=pl.BlockSpec((tm2, nOutP), lambda i: (i, 0)),
        ),
        compiler_params=pltpu.CompilerParams(
            dimension_semantics=("parallel",),
            vmem_limit_bytes=_VMEM_LIMIT),
    )(rf, rb, we_f, we_b, b_e)

    return out.reshape(T_pad, Bp, nOutP)[:T, :B, :nOut]


def _reference(x, wih, whh, b_ih, b_hh, w_emb, b_emb):
    """Pure-JAX f32 reference of the PyTorch forward pass."""
    T, B, _ = x.shape
    H = wih.shape[1] // 4

    def run_dir(d, xs):
        def step(carry, xt):
            h, c = carry
            gates = xt @ wih[d].T + b_ih[d] + h @ whh[d].T + b_hh[d]
            i, f, g, o = jnp.split(gates, 4, axis=-1)
            i, f, o = jax.nn.sigmoid(i), jax.nn.sigmoid(f), jax.nn.sigmoid(o)
            g = jnp.tanh(g)
            c = f * c + i * g
            h = o * jnp.tanh(c)
            return (h, c), h

        init = (jnp.zeros((B, H), jnp.float32), jnp.zeros((B, H), jnp.float32))
        _, hs = jax.lax.scan(step, init, xs)
        return hs

    h_fwd = run_dir(0, x)
    h_bwd = run_dir(1, x[::-1])[::-1]
    rec = jnp.concatenate([h_fwd, h_bwd], axis=-1)
    out = rec.reshape(T * B, 2 * H) @ w_emb.T + b_emb
    return out.reshape(T, B, -1)


if __name__ == "__main__":
    # Small shapes consistent with the module's forward (seq-first 3D input).
    # H=32 exercises lane padding (Hp=128), B=4 exercises sublane padding (Bp=8),
    # T=10 with time_chunk=4 exercises the streamed, ragged (T_pad=12) chunk path.
    T, B, nIn, H, nOut = 10, 4, 48, 32, 16
    key = jax.random.PRNGKey(0)
    ks = jax.random.split(key, 7)
    scale = 1.0 / jnp.sqrt(jnp.float32(H))

    x = jax.random.normal(ks[0], (T, B, nIn), jnp.float32)
    # Deterministic synthetic parameters (PyTorch-style U(-1/sqrt(H), 1/sqrt(H))).
    wih = jax.random.uniform(ks[1], (2, 4 * H, nIn), jnp.float32, -scale, scale)
    whh = jax.random.uniform(ks[2], (2, 4 * H, H), jnp.float32, -scale, scale)
    b_ih = jax.random.uniform(ks[3], (2, 4 * H), jnp.float32, -scale, scale)
    b_hh = jax.random.uniform(ks[4], (2, 4 * H), jnp.float32, -scale, scale)
    w_emb = jax.random.uniform(ks[5], (nOut, 2 * H), jnp.float32, -scale, scale)
    b_emb = jax.random.uniform(ks[6], (nOut,), jnp.float32, -scale, scale)

    out = bidirectional_lstm_pallas(x, wih, whh, b_ih, b_hh, w_emb, b_emb,
                                    time_chunk=4)
    out = jax.block_until_ready(out)
    assert out.shape == (T, B, nOut)

    ref = _reference(x, wih, whh, b_ih, b_hh, w_emb, b_emb)
    max_err = float(jnp.max(jnp.abs(out - ref)))
    # bf16 storage of gates_x / rec and bf16 MXU operands (f32 accumulation, f32 h/c)
    # => looser tolerance than the pure-f32 variant.
    assert max_err < 7.5e-2, f"max_err={max_err}"

    print("KERNEL_OK")
</pallas_src>

<mosaic_0001>
module attributes {stable_mosaic.version = 11 : i64} {
  func.func @_matmul_bias_kernel(%arg0: i32, %arg1: memref<96x48xbf16, #tpu.memory_space<vmem>>, %arg2: memref<48x512xbf16, #tpu.memory_space<vmem>>, %arg3: memref<1x512xf32, #tpu.memory_space<vmem>>, %arg4: memref<96x512xbf16, #tpu.memory_space<vmem>>) attributes {dimension_semantics = [#tpu.dimension_semantics<parallel>], iteration_bounds = array<i64: 1>, scalar_prefetch = 0 : i64, scratch_operands = 0 : i64, tpu.core_type = #tpu.core_type<tc>, window_params = [{transform_indices = @transform_0, window_bounds = array<i64: 96, 48>}, {pipeline_mode = #tpu.pipeline_mode<synchronous>, transform_indices = @transform_1, window_bounds = array<i64: 48, 512>}, {pipeline_mode = #tpu.pipeline_mode<synchronous>, transform_indices = @transform_2, window_bounds = array<i64: 1, 512>}, {transform_indices = @transform_3, window_bounds = array<i64: 96, 512>}]} {
    %c0 = arith.constant 0 : index
    %c0_0 = arith.constant 0 : index
    %0 = vector.load %arg1[%c0, %c0_0] : memref<96x48xbf16, #tpu.memory_space<vmem>>, vector<96x48xbf16>
    %c0_1 = arith.constant 0 : index
    %c0_2 = arith.constant 0 : index
    %1 = vector.load %arg2[%c0_1, %c0_2] : memref<48x512xbf16, #tpu.memory_space<vmem>>, vector<48x512xbf16>
    %cst = arith.constant dense<0.000000e+00> : vector<96x512xf32>
    %2 = tpu.matmul %0, %1, %cst {dimension_numbers = #tpu.dot_dimension_numbers<[1], [0], [0], [1], [0, 0, 1, 1], [], []>} : vector<96x48xbf16>, vector<48x512xbf16>, vector<96x512xf32> -> vector<96x512xf32>
    %c0_3 = arith.constant 0 : index
    %c0_4 = arith.constant 0 : index
    %3 = vector.load %arg3[%c0_3, %c0_4] : memref<1x512xf32, #tpu.memory_space<vmem>>, vector<1x512xf32>
    %4 = vector.broadcast %3 : vector<1x512xf32> to vector<96x512xf32>
    %5 = arith.addf %2, %4 : vector<96x512xf32>
    %6 = arith.truncf %5 : vector<96x512xf32> to vector<96x512xbf16>
    %c0_5 = arith.constant 0 : index
    %c0_6 = arith.constant 0 : index
    %7 = vector.load %arg4[%c0_5, %c0_6] : memref<96x512xbf16, #tpu.memory_space<vmem>>, vector<96x512xbf16>
    tpu.vector_store %arg4[%c0_5, %c0_6], %6 {strides = array<i32>} : memref<96x512xbf16, #tpu.memory_space<vmem>>, vector<96x512xbf16>,
    return
  }
  func.func @transform_0(%arg0: i32) -> (i32, i32) {
    %c0_i32 = arith.constant 0 : i32
    %c0_i32_0 = arith.constant 0 : i32
    return %arg0, %c0_i32 : i32, i32
  }
  func.func @transform_1(%arg0: i32) -> (i32, i32) {
    %c0_i32 = arith.constant 0 : i32
    %c0_i32_0 = arith.constant 0 : i32
    %c0_i32_1 = arith.constant 0 : i32
    return %c0_i32, %c0_i32_0 : i32, i32
  }
  func.func @transform_2(%arg0: i32) -> (i32, i32) {
    %c0_i32 = arith.constant 0 : i32
    %c0_i32_0 = arith.constant 0 : i32
    %c0_i32_1 = arith.constant 0 : i32
    return %c0_i32, %c0_i32_0 : i32, i32
  }
  func.func @transform_3(%arg0: i32) -> (i32, i32) {
    %c0_i32 = arith.constant 0 : i32
    %c0_i32_0 = arith.constant 0 : i32
    return %arg0, %c0_i32 : i32, i32
  }
}

</mosaic_0001>

<llo_original>
// kernel: tpu_custom_call.1
$region0: #{tpu_custom_call.1}
  #allocation0 [shape = 'u32[]', space=smem, size = 0x4, offset = 0x4, fixed_abs, tag = 'smem constant byte address 0x4 - core index']
  #allocation1 [shape = 'u32[144,128]{1,0:T(1,128)}', space=vmem, size = 0x12000, scoped, tag = 'internal scratch']
  %s0 = inlined_call_operand.vmem [shape: bf16[96,48], index: 0, kind: input, shape index: {}]
  %s1 = inlined_call_operand.hbm [shape: bf16[48,512], index: 1, kind: input, shape index: {}]
  %s2 = inlined_call_operand.vmem [shape: f32[1,512], index: 2, kind: input, shape index: {}]
  %s3 = inlined_call_operand.hbm [shape: bf16[96,512], index: 3, kind: output, shape index: {}]
  %s4 = sld [smem:[#allocation0]]
  $region26: #{tpu_custom_call.1} parent=0
    _
  %s6 = ssub.s32 1, %s4
  %s7 = scalar_select 0, %s6, %s4
  $region1: #{tpu_custom_call.1} parent=0
    #allocation2 [shape = 'u8[49152]{0}', space=vmem, size = 0xc000, scoped, tag = 'input window, operand 1, single buffered']
    #allocation3 [shape = 's32[1]{0}', space=sflag, size = 0x4, scoped, tag = 'scoped memory for tpu_custom_call.1']
    #allocation4 [shape = 's32[1]{0}', space=sflag, size = 0x4, scoped, tag = 'scoped memory for tpu_custom_call.1']
    #allocation5 [shape = 'u8[98304]{0}', space=vmem, size = 0x18000, scoped, tag = 'output window, operand 0, single buffered']
    %8 = vsyncpa [#allocation3], 0
    %9 = vsyncpa [#allocation4], 0
    // Predicated region
    $region2: #{tpu_custom_call.1} parent=1 // pred_check
      _
    $region3: #{tpu_custom_call.1} parent=1 // pred_check_branch
      %11 = sbr.rel (0) target = $region5
    $region4: #{tpu_custom_call.1} parent=1 // pred_region
      _
    $region5: #{tpu_custom_call.1} parent=1 // pred_fallthru
      _
    // Predicated region
    $region6: #{tpu_custom_call.1} parent=1 // pred_check
      _
    $region7: #{tpu_custom_call.1} parent=1 // pred_check_branch
      %13 = sbr.rel (0) target = $region9
    $region8: #{tpu_custom_call.1} parent=1 // pred_region
      %s15 = ssub.s32 1536, 1536
      %16 = vsyncadd [#allocation3], %s15
      %s17 = sshll.u32 [#allocation2], 4
      %s18 = int_to_ptr.vmem [resolvable:$true] %s17
      %23 = dma.hbm_to_vmem [thread:$0]  %s1, 1536, %s18, [#allocation3], 256, 256, 16
    $region9: #{tpu_custom_call.1} parent=1 // pred_fallthru
      _
    // Predicated region
    $region10: #{tpu_custom_call.1} parent=1 // pred_check
      _
    $region11: #{tpu_custom_call.1} parent=1 // pred_check_branch
      %25 = sbr.rel (0) target = $region13
    $region12: #{tpu_custom_call.1} parent=1 // pred_region
      _
    $region13: #{tpu_custom_call.1} parent=1 // pred_fallthru
      _
    // Predicated region
    $region14: #{tpu_custom_call.1} parent=1 // pred_check
      _
    $region15: #{tpu_custom_call.1} parent=1 // pred_check_branch
      %27 = sbr.rel (0) target = $region17
    $region16: #{tpu_custom_call.1} parent=1 // pred_region
      %28 = dma.done [#allocation3], 1536
    $region17: #{tpu_custom_call.1} parent=1 // pred_fallthru
      _
    %v30 = vld [vmem:[%s0] sm:$0xf]
    %v31 = vld [vmem:[%s0 + $0x4] sm:$0xf]
    %v32 = vld [vmem:[%s0 + $0x8] sm:$0xf]
    %v33 = vld [vmem:[%s0 + $0xc] sm:$0xf]
    %v34 = vld [vmem:[%s0 + $0x10] sm:$0xf]
    %v35 = vld [vmem:[%s0 + $0x14] sm:$0xf]
    %v36 = vld [vmem:[%s0 + $0x18] sm:$0xf]
    %v37 = vld [vmem:[%s0 + $0x1c] sm:$0xf]
    %v38 = vld [vmem:[%s0 + $0x20] sm:$0xf]
    %v39 = vld [vmem:[%s0 + $0x24] sm:$0xf]
    %v40 = vld [vmem:[%s0 + $0x28] sm:$0xf]
    %v41 = vld [vmem:[%s0 + $0x2c] sm:$0xf]
    %v42 = vld [vmem:[#allocation2] sm:$0xff]
    %v43 = vld [vmem:[#allocation2 + $0x8] sm:$0xff]
    %v44 = vld [vmem:[#allocation2 + $0x10] sm:$0xff]
    %v45 = vld [vmem:[#allocation2 + $0x18] sm:$0xff]
    %v46 = vld [vmem:[#allocation2 + $0x20] sm:$0xff]
    %v47 = vld [vmem:[#allocation2 + $0x28] sm:$0xff]
    %v48 = vld [vmem:[#allocation2 + $0x30] sm:$0xff]
    %v49 = vld [vmem:[#allocation2 + $0x38] sm:$0xff]
    %v50 = vld [vmem:[#allocation2 + $0x40] sm:$0xff]
    %v51 = vld [vmem:[#allocation2 + $0x48] sm:$0xff]
    %v52 = vld [vmem:[#allocation2 + $0x50] sm:$0xff]
    %v53 = vld [vmem:[#allocation2 + $0x58] sm:$0xff]
    %v54 = vld [vmem:[%s2] sm:$0xf]
    %v56 = vlaneseq
    %v57 = vshrl.u32 %v56, 7
    %v58 = vsub.s32 0, %v57
    %v59 = vrot.slane %v54, %v58
    %v60 = vlaneseq
    %v61 = vshrl.u32 %v60, 7
    %v62 = vsub.s32 1, %v61
    %v63 = vrot.slane %v54, %v62
    %v64 = vlaneseq
    %v65 = vshrl.u32 %v64, 7
    %v66 = vsub.s32 2, %v65
    %v67 = vrot.slane %v54, %v66
    %v68 = vlaneseq
    %v69 = vshrl.u32 %v68, 7
    %v70 = vsub.s32 3, %v69
    %v71 = vrot.slane %v54, %v70
    %v88 = vunpack.c.l.b16 %v30
    %v89 = vunpack.c.l.b16 %v31
    %v90 = vunpack.c.l.b16 %v32
    %v91 = vunpack.c.l.b16 %v33
    %v92 = vunpack.c.l.b16 %v34
    %v93 = vunpack.c.l.b16 %v35
    %v94 = vunpack.c.l.b16 %v36
    %v95 = vunpack.c.l.b16 %v37
    %v96 = vunpack.c.l.b16 %v38
    %v97 = vunpack.c.l.b16 %v39
    %v98 = vunpack.c.l.b16 %v40
    %v99 = vunpack.c.l.b16 %v41
    %v100 = vpack.c.b16 %v89, %v88
    %v101 = vpack.c.b16 %v91, %v90
    %v102 = vpack.c.b16 %v93, %v92
    %v103 = vpack.c.b16 %v95, %v94
    %v104 = vpack.c.b16 %v97, %v96
    %v105 = vpack.c.b16 %v99, %v98
    %v118 = vunpack.c.l.b16 %v42
    %v119 = vunpack.c.h.b16 %v42
    %v120 = vunpack.c.l.b16 %v43
    %v121 = vunpack.c.h.b16 %v43
    %v122 = vunpack.c.l.b16 %v44
    %v123 = vunpack.c.h.b16 %v44
    %v124 = vunpack.c.l.b16 %v45
    %v125 = vunpack.c.h.b16 %v45
    %v126 = vunpack.c.l.b16 %v46
    %v127 = vunpack.c.h.b16 %v46
    %v128 = vunpack.c.l.b16 %v47
    %v129 = vunpack.c.h.b16 %v47
    %v130 = vunpack.c.l.b16 %v48
    %v131 = vunpack.c.h.b16 %v48
    %v132 = vunpack.c.l.b16 %v49
    %v133 = vunpack.c.h.b16 %v49
    %v134 = vunpack.c.l.b16 %v50
    %v135 = vunpack.c.h.b16 %v50
    %v136 = vunpack.c.l.b16 %v51
    %v137 = vunpack.c.h.b16 %v51
    %v138 = vunpack.c.l.b16 %v52
    %v139 = vunpack.c.h.b16 %v52
    %v140 = vunpack.c.l.b16 %v53
    %v141 = vunpack.c.h.b16 %v53
    %v142 = vpack.c.b16 %v122, %v118
    %v143 = vpack.c.b16 %v123, %v119
    %v144 = vpack.c.b16 %v124, %v120
    %v145 = vpack.c.b16 %v125, %v121
    %v146 = vpack.c.b16 %v130, %v126
    %v147 = vpack.c.b16 %v131, %v127
    %v148 = vpack.c.b16 %v132, %v128
    %v149 = vpack.c.b16 %v133, %v129
    %v150 = vpack.c.b16 %v138, %v134
    %v151 = vpack.c.b16 %v139, %v135
    %v152 = vpack.c.b16 %v140, %v136
    %v153 = vpack.c.b16 %v141, %v137
    %vm166 = vcmask 392192
    %v168 = vsel %vm166, %v100, 0
    %v171 = vsel %vm166, %v101, 0
    %v174 = vsel %vm166, %v102, 0
    %v177 = vsel %vm166, %v103, 0
    %v180 = vsel %vm166, %v104, 0
    %v183 = vsel %vm166, %v105, 0
    %185 = vmatprep.subr.bf16.mxu0 0
    %186 = vmatpush1.bf16.msra.mxu0 0
    %187 = vmatprep.subr.bf16.mxu0 0
    %188 = vmatpush1.bf16.msra.mxu0 0
    %189 = vmatprep.subr.bf16.mxu0 0
    %190 = vmatpush1.bf16.msra.mxu0 0
    %191 = vmatprep.subr.bf16.mxu0 0
    %192 = vmatpush1.bf16.msra.mxu0 0
    %193 = vmatprep.subr.bf16.mxu0 0
    %194 = vmatpush1.bf16.msra.mxu0 0
    %195 = vmatprep.subr.bf16.mxu0 %v151
    %196 = vmatpush1.bf16.msra.mxu0 %v150
    %197 = vmatprep.subr.bf16.mxu0 %v147
    %198 = vmatpush1.bf16.msra.mxu0 %v146
    %199 = vmatprep.subr.bf16.mxu0 %v143
    %200 = vmatpush1.bf16.msra.mxu0 %v142
    %201 = vmatprep.subr.bf16.mxu0 0
    %202 = vmatpush2.bf16.msra.mxu0 0
    %203 = vmatprep.subr.bf16.mxu0 0
    %204 = vmatpush2.bf16.msra.mxu0 0
    %205 = vmatprep.subr.bf16.mxu0 0
    %206 = vmatpush2.bf16.msra.mxu0 0
    %207 = vmatprep.subr.bf16.mxu0 0
    %208 = vmatpush2.bf16.msra.mxu0 0
    %209 = vmatprep.subr.bf16.mxu0 0
    %210 = vmatpush2.bf16.msra.mxu0 0
    %211 = vmatprep.subr.bf16.mxu0 0
    %212 = vmatpush2.bf16.msra.mxu0 0
    %213 = vmatprep.subr.bf16.mxu0 0
    %214 = vmatpush2.bf16.msra.mxu0 0
    %215 = vmatprep.subr.bf16.mxu0 0
    %216 = vmatpush2.bf16.msra.mxu0 0
    %217 = vmatprep.mubr.bf16.mxu0 0
    %218 = vmatmul.mubr.bf16.gmra.mxu0 %v168
    %v219 = vpop.f32.mrf.mxu0
    %v220 = vadd.f32 %v59, %v219
    %v221 = vpop.f32.mrf.mxu0
    %v222 = vadd.f32 %v63, %v221
    %v223 = vpop.f32.mrf.mxu0
    %v224 = vadd.f32 %v59, %v223
    %v225 = vpop.f32.mrf.mxu0
    %v226 = vadd.f32 %v63, %v225
    %227 = vmatprep.mubr.bf16.mxu0 0
    %228 = vmatmul.mubr.bf16.gmra.mxu0 %v171
    %v229 = vpop.f32.mrf.mxu0
    %v230 = vadd.f32 %v59, %v229
    %v231 = vpop.f32.mrf.mxu0
    %v232 = vadd.f32 %v63, %v231
    %v233 = vpop.f32.mrf.mxu0
    %v234 = vadd.f32 %v59, %v233
    %v235 = vpop.f32.mrf.mxu0
    %v236 = vadd.f32 %v63, %v235
    %237 = vmatprep.mubr.bf16.mxu0 0
    %238 = vmatmul.mubr.bf16.gmra.mxu0 %v174
    %v239 = vpop.f32.mrf.mxu0
    %v240 = vadd.f32 %v59, %v239
    %v241 = vpop.f32.mrf.mxu0
    %v242 = vadd.f32 %v63, %v241
    %v243 = vpop.f32.mrf.mxu0
    %v244 = vadd.f32 %v59, %v243
    %v245 = vpop.f32.mrf.mxu0
    %v246 = vadd.f32 %v63, %v245
    %247 = vmatprep.mubr.bf16.mxu0 0
    %248 = vmatmul.mubr.bf16.gmra.mxu0 %v177
    %v249 = vpop.f32.mrf.mxu0
    %v250 = vadd.f32 %v59, %v249
    %v251 = vpop.f32.mrf.mxu0
    %v252 = vadd.f32 %v63, %v251
    %v253 = vpop.f32.mrf.mxu0
    %v254 = vadd.f32 %v59, %v253
    %v255 = vpop.f32.mrf.mxu0
    %v256 = vadd.f32 %v63, %v255
    %257 = vmatprep.mubr.bf16.mxu0 0
    %258 = vmatmul.mubr.bf16.gmra.mxu0 %v180
    %v259 = vpop.f32.mrf.mxu0
    %v260 = vadd.f32 %v59, %v259
    %v261 = vpop.f32.mrf.mxu0
    %v262 = vadd.f32 %v63, %v261
    %v263 = vpop.f32.mrf.mxu0
    %v264 = vadd.f32 %v59, %v263
    %v265 = vpop.f32.mrf.mxu0
    %v266 = vadd.f32 %v63, %v265
    %267 = vmatprep.mubr.bf16.mxu0 0
    %268 = vmatmul.mubr.bf16.gmra.mxu0 %v183
    %v269 = vpop.f32.mrf.mxu0
    %v270 = vadd.f32 %v59, %v269
    %v271 = vpop.f32.mrf.mxu0
    %v272 = vadd.f32 %v63, %v271
    %v273 = vpop.f32.mrf.mxu0
    %v274 = vadd.f32 %v59, %v273
    %v275 = vpop.f32.mrf.mxu0
    %v276 = vadd.f32 %v63, %v275
    %277 = vdwg.mxu0
    %278 = vmatprep.subr.bf16.mxu0 0
    %279 = vmatpush1.bf16.msra.mxu0 0
    %280 = vmatprep.subr.bf16.mxu0 0
    %281 = vmatpush1.bf16.msra.mxu0 0
    %282 = vmatprep.subr.bf16.mxu0 0
    %283 = vmatpush1.bf16.msra.mxu0 0
    %284 = vmatprep.subr.bf16.mxu0 0
    %285 = vmatpush1.bf16.msra.mxu0 0
    %286 = vmatprep.subr.bf16.mxu0 0
    %287 = vmatpush1.bf16.msra.mxu0 0
    %288 = vmatprep.subr.bf16.mxu0 %v153
    %289 = vmatpush1.bf16.msra.mxu0 %v152
    %290 = vmatprep.subr.bf16.mxu0 %v149
    %291 = vmatpush1.bf16.msra.mxu0 %v148
    %292 = vmatprep.subr.bf16.mxu0 %v145
    %293 = vmatpush1.bf16.msra.mxu0 %v144
    %294 = vmatprep.subr.bf16.mxu0 0
    %295 = vmatpush2.bf16.msra.mxu0 0
    %296 = vmatprep.subr.bf16.mxu0 0
    %297 = vmatpush2.bf16.msra.mxu0 0
    %298 = vmatprep.subr.bf16.mxu0 0
    %299 = vmatpush2.bf16.msra.mxu0 0
    %300 = vmatprep.subr.bf16.mxu0 0
    %301 = vmatpush2.bf16.msra.mxu0 0
    %302 = vmatprep.subr.bf16.mxu0 0
    %303 = vmatpush2.bf16.msra.mxu0 0
    %304 = vmatprep.subr.bf16.mxu0 0
    %305 = vmatpush2.bf16.msra.mxu0 0
    %306 = vmatprep.subr.bf16.mxu0 0
    %307 = vmatpush2.bf16.msra.mxu0 0
    %308 = vmatprep.subr.bf16.mxu0 0
    %309 = vmatpush2.bf16.msra.mxu0 0
    %310 = vmatprep.mubr.bf16.mxu0 0
    %311 = vmatmul.mubr.bf16.gmra.mxu0 %v168
    %v312 = vpop.f32.mrf.mxu0
    %v313 = vadd.f32 %v67, %v312
    %v314 = vpop.f32.mrf.mxu0
    %v315 = vadd.f32 %v71, %v314
    %v316 = vpop.f32.mrf.mxu0
    %v317 = vadd.f32 %v67, %v316
    %v318 = vpop.f32.mrf.mxu0
    %v319 = vadd.f32 %v71, %v318
    %320 = vmatprep.mubr.bf16.mxu0 0
    %321 = vmatmul.mubr.bf16.gmra.mxu0 %v171
    %v322 = vpop.f32.mrf.mxu0
    %v323 = vadd.f32 %v67, %v322
    %v324 = vpop.f32.mrf.mxu0
    %v325 = vadd.f32 %v71, %v324
    %v326 = vpop.f32.mrf.mxu0
    %v327 = vadd.f32 %v67, %v326
    %v328 = vpop.f32.mrf.mxu0
    %v329 = vadd.f32 %v71, %v328
    %330 = vmatprep.mubr.bf16.mxu0 0
    %331 = vmatmul.mubr.bf16.gmra.mxu0 %v174
    %v332 = vpop.f32.mrf.mxu0
    %v333 = vadd.f32 %v67, %v332
    %v334 = vpop.f32.mrf.mxu0
    %v335 = vadd.f32 %v71, %v334
    %v336 = vpop.f32.mrf.mxu0
    %v337 = vadd.f32 %v67, %v336
    %v338 = vpop.f32.mrf.mxu0
    %v339 = vadd.f32 %v71, %v338
    %340 = vmatprep.mubr.bf16.mxu0 0
    %341 = vmatmul.mubr.bf16.gmra.mxu0 %v177
    %v342 = vpop.f32.mrf.mxu0
    %v343 = vadd.f32 %v67, %v342
    %v344 = vpop.f32.mrf.mxu0
    %v345 = vadd.f32 %v71, %v344
    %v346 = vpop.f32.mrf.mxu0
    %v347 = vadd.f32 %v67, %v346
    %v348 = vpop.f32.mrf.mxu0
    %v349 = vadd.f32 %v71, %v348
    %350 = vmatprep.mubr.bf16.mxu0 0
    %351 = vmatmul.mubr.bf16.gmra.mxu0 %v180
    %v352 = vpop.f32.mrf.mxu0
    %v353 = vadd.f32 %v67, %v352
    %v354 = vpop.f32.mrf.mxu0
    %v355 = vadd.f32 %v71, %v354
    %v356 = vpop.f32.mrf.mxu0
    %v357 = vadd.f32 %v67, %v356
    %v358 = vpop.f32.mrf.mxu0
    %v359 = vadd.f32 %v71, %v358
    %360 = vmatprep.mubr.bf16.mxu0 0
    %361 = vmatmul.mubr.bf16.gmra.mxu0 %v183
    %v362 = vpop.f32.mrf.mxu0
    %v363 = vadd.f32 %v67, %v362
    %v364 = vpop.f32.mrf.mxu0
    %v365 = vadd.f32 %v71, %v364
    %v366 = vpop.f32.mrf.mxu0
    %v367 = vadd.f32 %v67, %v366
    %v368 = vpop.f32.mrf.mxu0
    %v369 = vadd.f32 %v71, %v368
    %370 = vdwg.mxu0
    %v371 = vpack.c.bf16 %v224, %v220
    %v372 = vpack.c.bf16 %v226, %v222
    %v373 = vpack.c.bf16 %v317, %v313
    %v374 = vpack.c.bf16 %v319, %v315
    %v375 = vpack.c.bf16 %v234, %v230
    %v376 = vpack.c.bf16 %v236, %v232
    %v377 = vpack.c.bf16 %v327, %v323
    %v378 = vpack.c.bf16 %v329, %v325
    %v379 = vpack.c.bf16 %v244, %v240
    %v380 = vpack.c.bf16 %v246, %v242
    %v381 = vpack.c.bf16 %v337, %v333
    %v382 = vpack.c.bf16 %v339, %v335
    %v383 = vpack.c.bf16 %v254, %v250
    %v384 = vpack.c.bf16 %v256, %v252
    %v385 = vpack.c.bf16 %v347, %v343
    %v386 = vpack.c.bf16 %v349, %v345
    %v387 = vpack.c.bf16 %v264, %v260
    %v388 = vpack.c.bf16 %v266, %v262
    %v389 = vpack.c.bf16 %v357, %v353
    %v390 = vpack.c.bf16 %v359, %v355
    %v391 = vpack.c.bf16 %v274, %v270
    %v392 = vpack.c.bf16 %v276, %v272
    %v393 = vpack.c.bf16 %v367, %v363
    %v394 = vpack.c.bf16 %v369, %v365
    %v419 = vunpack.c.l.b16 %v371
    %v420 = vunpack.c.l.b16 %v372
    %v421 = vunpack.c.l.b16 %v373
    %v422 = vunpack.c.l.b16 %v374
    %v423 = vunpack.c.h.b16 %v371
    %v424 = vunpack.c.h.b16 %v372
    %v425 = vunpack.c.h.b16 %v373
    %v426 = vunpack.c.h.b16 %v374
    %v427 = vunpack.c.l.b16 %v375
    %v428 = vunpack.c.l.b16 %v376
    %v429 = vunpack.c.l.b16 %v377
    %v430 = vunpack.c.l.b16 %v378
    %v431 = vunpack.c.h.b16 %v375
    %v432 = vunpack.c.h.b16 %v376
    %v433 = vunpack.c.h.b16 %v377
    %v434 = vunpack.c.h.b16 %v378
    %v435 = vunpack.c.l.b16 %v379
    %v436 = vunpack.c.l.b16 %v380
    %v437 = vunpack.c.l.b16 %v381
    %v438 = vunpack.c.l.b16 %v382
    %v439 = vunpack.c.h.b16 %v379
    %v440 = vunpack.c.h.b16 %v380
    %v441 = vunpack.c.h.b16 %v381
    %v442 = vunpack.c.h.b16 %v382
    %v443 = vunpack.c.l.b16 %v383
    %v444 = vunpack.c.l.b16 %v384
    %v445 = vunpack.c.l.b16 %v385
    %v446 = vunpack.c.l.b16 %v386
    %v447 = vunpack.c.h.b16 %v383
    %v448 = vunpack.c.h.b16 %v384
    %v449 = vunpack.c.h.b16 %v385
    %v450 = vunpack.c.h.b16 %v386
    %v451 = vunpack.c.l.b16 %v387
    %v452 = vunpack.c.l.b16 %v388
    %v453 = vunpack.c.l.b16 %v389
    %v454 = vunpack.c.l.b16 %v390
    %v455 = vunpack.c.h.b16 %v387
    %v456 = vunpack.c.h.b16 %v388
    %v457 = vunpack.c.h.b16 %v389
    %v458 = vunpack.c.h.b16 %v390
    %v459 = vunpack.c.l.b16 %v391
    %v460 = vunpack.c.l.b16 %v392
    %v461 = vunpack.c.l.b16 %v393
    %v462 = vunpack.c.l.b16 %v394
    %v463 = vunpack.c.h.b16 %v391
    %v464 = vunpack.c.h.b16 %v392
    %v465 = vunpack.c.h.b16 %v393
    %v466 = vunpack.c.h.b16 %v394
    %v467 = vpack.c.b16 %v420, %v419
    %v468 = vpack.c.b16 %v422, %v421
    %v469 = vpack.c.b16 %v424, %v423
    %v470 = vpack.c.b16 %v426, %v425
    %v471 = vpack.c.b16 %v428, %v427
    %v472 = vpack.c.b16 %v430, %v429
    %v473 = vpack.c.b16 %v432, %v431
    %v474 = vpack.c.b16 %v434, %v433
    %v475 = vpack.c.b16 %v436, %v435
    %v476 = vpack.c.b16 %v438, %v437
    %v477 = vpack.c.b16 %v440, %v439
    %v478 = vpack.c.b16 %v442, %v441
    %v479 = vpack.c.b16 %v444, %v443
    %v480 = vpack.c.b16 %v446, %v445
    %v481 = vpack.c.b16 %v448, %v447
    %v482 = vpack.c.b16 %v450, %v449
    %v483 = vpack.c.b16 %v452, %v451
    %v484 = vpack.c.b16 %v454, %v453
    %v485 = vpack.c.b16 %v456, %v455
    %v486 = vpack.c.b16 %v458, %v457
    %v487 = vpack.c.b16 %v460, %v459
    %v488 = vpack.c.b16 %v462, %v461
    %v489 = vpack.c.b16 %v464, %v463
    %v490 = vpack.c.b16 %v466, %v465
    %515 = vst [vmem:[#allocation5] sm:$0xff] %v467
    %516 = vst [vmem:[#allocation5 + $0x8] sm:$0xff] %v468
    %517 = vst [vmem:[#allocation5 + $0x10] sm:$0xff] %v469
    %518 = vst [vmem:[#allocation5 + $0x18] sm:$0xff] %v470
    %519 = vst [vmem:[#allocation5 + $0x20] sm:$0xff] %v471
    %520 = vst [vmem:[#allocation5 + $0x28] sm:$0xff] %v472
    %521 = vst [vmem:[#allocation5 + $0x30] sm:$0xff] %v473
    %522 = vst [vmem:[#allocation5 + $0x38] sm:$0xff] %v474
    %523 = vst [vmem:[#allocation5 + $0x40] sm:$0xff] %v475
    %524 = vst [vmem:[#allocation5 + $0x48] sm:$0xff] %v476
    %525 = vst [vmem:[#allocation5 + $0x50] sm:$0xff] %v477
    %526 = vst [vmem:[#allocation5 + $0x58] sm:$0xff] %v478
    %527 = vst [vmem:[#allocation5 + $0x60] sm:$0xff] %v479
    %528 = vst [vmem:[#allocation5 + $0x68] sm:$0xff] %v480
    %529 = vst [vmem:[#allocation5 + $0x70] sm:$0xff] %v481
    %530 = vst [vmem:[#allocation5 + $0x78] sm:$0xff] %v482
    %531 = vst [vmem:[#allocation5 + $0x80] sm:$0xff] %v483
    %532 = vst [vmem:[#allocation5 + $0x88] sm:$0xff] %v484
    %533 = vst [vmem:[#allocation5 + $0x90] sm:$0xff] %v485
    %534 = vst [vmem:[#allocation5 + $0x98] sm:$0xff] %v486
    %535 = vst [vmem:[#allocation5 + $0xa0] sm:$0xff] %v487
    %536 = vst [vmem:[#allocation5 + $0xa8] sm:$0xff] %v488
    %537 = vst [vmem:[#allocation5 + $0xb0] sm:$0xff] %v489
    %538 = vst [vmem:[#allocation5 + $0xb8] sm:$0xff] %v490
    // Predicated region
    $region18: #{tpu_custom_call.1} parent=1 // pred_check
      _
    $region19: #{tpu_custom_call.1} parent=1 // pred_check_branch
      %540 = sbr.rel (0) target = $region21
    $region20: #{tpu_custom_call.1} parent=1 // pred_region
      %s542 = ssub.s32 3072, 3072
      %543 = vsyncadd [#allocation4], %s542
      %s544 = sshll.u32 [#allocation5], 4
      %s545 = int_to_ptr.vmem [resolvable:$true] %s544
      %550 = dma.vmem_to_hbm [thread:$0]  %s545, 3072, %s3, [#allocation4], 256, 256, 16
    $region21: #{tpu_custom_call.1} parent=1 // pred_fallthru
      _
    // Predicated region
    $region22: #{tpu_custom_call.1} parent=1 // pred_check
      _
    $region23: #{tpu_custom_call.1} parent=1 // pred_check_branch
      %552 = sbr.rel (0) target = $region25
    $region24: #{tpu_custom_call.1} parent=1 // pred_region
      %553 = dma.done [#allocation4], 3072
    $region25: #{tpu_custom_call.1} parent=1 // pred_fallthru
      _
    %554 = vsyncpa [#allocation3], 1
    %555 = vsyncpa [#allocation4], 1

</llo_original>
